<compile_context>
chip_gen: v7x
topology: tpu7x:2x2x1
jax: 0.10.0
libtpu: 0.0.40
codegen_flags: <defaults>
</compile_context>

<pallas_src>
import functools

import jax
import jax.numpy as jnp
from jax import lax
from jax.experimental import pallas as pl
from jax.experimental.pallas import tpu as pltpu


# ----------------------------------------------------------------------------
# Kernel
# ----------------------------------------------------------------------------
def _contrastive_loss_kernel(scores_ref, diag_col_ref, diag_row_ref,
                             out_ref, colmax_out_ref,
                             col_acc_ref, rowmax_acc_ref, colmax_ref,
                             *, margin, direction, max_violation,
                             average_batch, batch_size, block_rows,
                             blocks_per_split):
    i = pl.program_id(0)            # core split ("parallel")
    j = pl.program_id(1)            # row-block within the split ("arbitrary")

    need_s = direction in ('i2t', 'bi')      # negative sentences (i2t)
    need_im = direction in ('t2i', 'bi')     # negative images    (t2i)

    @pl.when(j == 0)
    def _init():
        if max_violation:
            if need_s:
                rowmax_acc_ref[...] = jnp.zeros_like(rowmax_acc_ref)
            if need_im:
                colmax_ref[...] = jnp.zeros_like(colmax_ref)
        else:
            col_acc_ref[...] = jnp.zeros_like(col_acc_ref)

    s = scores_ref[...].astype(jnp.float32)           # native-dtype DMA, f32 math
    tm, B = s.shape
    ms = margin + s                                    # shared by both directions

    if max_violation:
        # Diagonal mask is required here: the unmasked diagonal entry is exactly
        # relu(margin) and could wrongly win the row/column max.
        row0 = (i * blocks_per_split + j) * block_rows
        row_ids = row0 + lax.broadcasted_iota(jnp.int32, (tm, B), 0)
        col_ids = lax.broadcasted_iota(jnp.int32, (tm, B), 1)
        off_diag = row_ids != col_ids
        if need_s:
            d1 = diag_col_ref[...].astype(jnp.float32)                 # (tm, 1)
            cost_s = jnp.where(off_diag, jnp.maximum(ms - d1, 0.0), 0.0)
            rowmax_acc_ref[...] += jnp.max(cost_s, axis=1, keepdims=True)
        if need_im:
            d2 = diag_row_ref[...].astype(jnp.float32)                 # (1, B)
            cost_im = jnp.where(off_diag, jnp.maximum(ms - d2, 0.0), 0.0)
            colmax_ref[...] = jnp.maximum(
                colmax_ref[...], jnp.max(cost_im, axis=0, keepdims=True))
    else:
        # Sum paths: no diagonal mask; the diagonal contributes exactly
        # relu(margin) per row and is subtracted once in finalize.
        contrib = None
        if need_s:
            d1 = diag_col_ref[...].astype(jnp.float32)                 # (tm, 1)
            contrib = jnp.maximum(ms - d1, 0.0)
        if need_im:
            d2 = diag_row_ref[...].astype(jnp.float32)                 # (1, B)
            cost_im = jnp.maximum(ms - d2, 0.0)
            contrib = cost_im if contrib is None else contrib + cost_im
        col_acc_ref[...] += jnp.sum(contrib, axis=0, keepdims=True)    # (1, B)

    @pl.when(j == blocks_per_split - 1)
    def _finalize():
        total = jnp.zeros((1, 1), jnp.float32)
        if max_violation:
            batch_topk = 1     # only topk=1 (module default) supported
            scale = 1.0 / batch_topk
            if average_batch:
                scale = scale / batch_size
            if need_s:
                total = total + jnp.sum(rowmax_acc_ref[...], keepdims=True) * scale
            if need_im:
                # t2i column max needs all rows -> emit this split's partial and
                # let the wrapper combine across splits.
                colmax_out_ref[...] = colmax_ref[...].reshape(1, 1, B)
            else:
                colmax_out_ref[...] = jnp.zeros_like(colmax_out_ref)
        else:
            scale = (1.0 / (batch_size * (batch_size - 1))) if average_batch else 1.0
            n_dirs = int(need_s) + int(need_im)
            rows_here = blocks_per_split * block_rows      # rows handled by this split
            residual = n_dirs * rows_here * max(float(margin), 0.0)
            total = (jnp.sum(col_acc_ref[...], keepdims=True) - residual) * scale
            colmax_out_ref[...] = jnp.zeros_like(colmax_out_ref)
        out_ref[...] = total.reshape(1, 1, 1)


# ----------------------------------------------------------------------------
# Tiling policy
# ----------------------------------------------------------------------------
def _auto_block_rows(B, itemsize, pack):
    """Largest divisor of B (multiple of `pack`) whose double-buffered tile fits budget."""
    per_row_bytes = B * itemsize
    budget = 12 * (1 << 20)                          # double-buffered scores input budget
    cap = max(pack, budget // (2 * per_row_bytes))
    floor_rows = max(pack, (512 * 1024) // max(per_row_bytes, 1))
    target = max(min(cap, B), min(floor_rows, B))
    best = None
    r = pack
    while r <= target:
        if B % r == 0:
            best = r
        r += pack
    return best if best is not None else B


# ----------------------------------------------------------------------------
# Wrapper
# ----------------------------------------------------------------------------
def contrastive_loss(scores, *, margin=0.0, max_violation=False, direction='bi',
                     topk=1, average_batch=True, block_rows=None, core_split=None):
    if direction not in ('i2t', 't2i', 'bi'):
        raise ValueError(f"unknown direction {direction!r}")
    B = scores.shape[0]
    if scores.ndim != 2 or scores.shape != (B, B):
        raise ValueError("scores must be (batch, batch)")
    if max_violation and min(B, topk) != 1:
        # TODO(synk): torch.topk with k > 1 needs an in-kernel iterative
        # max-and-mask (or sort); only the default topk=1 path is implemented.
        raise NotImplementedError("max_violation with topk > 1 is not implemented")

    # Stream bf16 natively (cast to f32 inside the kernel); everything else -> f32.
    if scores.dtype != jnp.bfloat16:
        scores = scores.astype(jnp.float32)
    itemsize = scores.dtype.itemsize
    pack = 16 if itemsize == 2 else 8                 # sublane packing for the tile

    diag = jnp.diagonal(scores).astype(jnp.float32)   # tiny glue gather (B elems)
    diag_col = diag.reshape(B, 1)
    diag_row = diag.reshape(1, B)

    if block_rows is None:
        block_rows = _auto_block_rows(B, itemsize, pack)
    if B % block_rows != 0:
        raise ValueError("block_rows must divide the batch size")
    if block_rows != B and block_rows % pack != 0:
        raise ValueError(
            f"block_rows must be a multiple of {pack} for dtype {scores.dtype}")

    n_blk = B // block_rows
    if core_split is None:
        core_split = 2 if (n_blk >= 2 and n_blk % 2 == 0) else 1
    if n_blk % core_split != 0:
        raise ValueError("core_split must divide the number of row blocks")
    bps = n_blk // core_split

    # Explicit VMEM budget (keeps v5e/v7x scoped limits happy, leaves headroom).
    tile_bytes = block_rows * B * itemsize
    est = (2 * tile_bytes                 # scores, double-buffered
           + 2 * block_rows * 4           # diag_col, double-buffered
           + 2 * B * 4                    # diag_row
           + (block_rows + 2 * B + 16) * 4)  # scratch + outputs
    vmem_limit = int(min(48 << 20, max(32 << 20, 2 * est)))

    kernel = functools.partial(
        _contrastive_loss_kernel,
        margin=float(margin), direction=direction,
        max_violation=bool(max_violation), average_batch=bool(average_batch),
        batch_size=B, block_rows=block_rows, blocks_per_split=bps)

    out_scalar, out_colmax = pl.pallas_call(
        kernel,
        grid=(core_split, bps),
        out_shape=(jax.ShapeDtypeStruct((core_split, 1, 1), jnp.float32),
                   jax.ShapeDtypeStruct((core_split, 1, B), jnp.float32)),
        in_specs=[
            pl.BlockSpec((block_rows, B), lambda i, j: (i * bps + j, 0)),  # row tile
            pl.BlockSpec((block_rows, 1), lambda i, j: (i * bps + j, 0)),  # d1 rows
            pl.BlockSpec((1, B), lambda i, j: (0, 0)),                     # d2, resident
        ],
        out_specs=(
            pl.BlockSpec((1, 1, 1), lambda i, j: (i, 0, 0)),   # per-split scalar partial
            pl.BlockSpec((1, 1, B), lambda i, j: (i, 0, 0)),   # per-split column max
        ),
        scratch_shapes=[
            pltpu.VMEM((1, B), jnp.float32),            # column partial sums
            pltpu.VMEM((block_rows, 1), jnp.float32),   # i2t row-max partial sums
            pltpu.VMEM((1, B), jnp.float32),            # t2i running column max
        ],
        compiler_params=pltpu.CompilerParams(
            dimension_semantics=("parallel", "arbitrary"),
            vmem_limit_bytes=vmem_limit),
    )(scores, diag_col, diag_row)

    total = jnp.sum(out_scalar[:, 0, 0])
    if max_violation and direction in ('t2i', 'bi'):
        scale = 1.0  # batch_topk == 1
        if average_batch:
            scale = scale / B
        colmax = jnp.max(out_colmax[:, 0, :], axis=0)   # combine splits (B elems of glue)
        total = total + jnp.sum(colmax) * scale
    return total


# ----------------------------------------------------------------------------
# Pure-JAX reference (line-for-line port of the PyTorch module)
# ----------------------------------------------------------------------------
def contrastive_loss_ref(scores, *, margin=0.0, max_violation=False,
                         direction='bi', topk=1, average_batch=True):
    scores = scores.astype(jnp.float32)
    B = scores.shape[0]
    diag = jnp.diagonal(scores)
    eye = jnp.eye(B, dtype=bool)
    batch_topk = min(B, topk)
    cost_s_total = jnp.float32(0.0)
    cost_im_total = jnp.float32(0.0)
    if direction in ('i2t', 'bi'):
        cost_s = jnp.maximum(margin + scores - diag[:, None], 0.0)
        cost_s = jnp.where(eye, 0.0, cost_s)
        if max_violation:
            cost_s = lax.top_k(cost_s, batch_topk)[0] / batch_topk
            if average_batch:
                cost_s = cost_s / B
        elif average_batch:
            cost_s = cost_s / (B * (B - 1))
        cost_s_total = jnp.sum(cost_s)
    if direction in ('t2i', 'bi'):
        cost_im = jnp.maximum(margin + scores - diag[None, :], 0.0)
        cost_im = jnp.where(eye, 0.0, cost_im)
        if max_violation:
            cost_im = lax.top_k(cost_im.T, batch_topk)[0] / batch_topk
            if average_batch:
                cost_im = cost_im / B
        elif average_batch:
            cost_im = cost_im / (B * (B - 1))
        cost_im_total = jnp.sum(cost_im)
    if direction == 'i2t':
        return cost_s_total
    if direction == 't2i':
        return cost_im_total
    return cost_s_total + cost_im_total


if __name__ == "__main__":
    key = jax.random.PRNGKey(0)
    B = 32
    scores_f32 = jax.random.normal(key, (B, B), jnp.float32)

    configs = [
        dict(margin=0.2, max_violation=False, direction='bi', average_batch=True),
        dict(margin=0.2, max_violation=True, direction='bi', average_batch=True),
        dict(margin=0.1, max_violation=False, direction='i2t', average_batch=True),
        dict(margin=0.1, max_violation=True, direction='t2i', average_batch=False),
        dict(margin=0.3, max_violation=False, direction='t2i', average_batch=False),
        dict(margin=0.3, max_violation=True, direction='i2t', average_batch=True),
    ]

    def check(got, want, cfg, tag):
        got = jax.block_until_ready(got)
        assert got.shape == (), (tag, cfg, got.shape)
        assert bool(jnp.isfinite(got)), (tag, cfg)
        err = abs(float(got) - float(want))
        tol = 1e-4 * max(1.0, abs(float(want)))
        assert err <= tol, (tag, cfg, float(got), float(want), err)

    for cfg in configs:
        want = contrastive_loss_ref(scores_f32, topk=1, **cfg)
        # multi-block accumulation + 2-way core split path
        check(contrastive_loss(scores_f32, block_rows=8, **cfg), want, cfg, "f32/tiled")
        # auto tiling (single full-size block)
        check(contrastive_loss(scores_f32, **cfg), want, cfg, "f32/auto")

    # bf16 native streaming path (block_rows must be a multiple of 16)
    scores_bf16 = scores_f32.astype(jnp.bfloat16)
    for cfg in configs[:2]:
        want = contrastive_loss_ref(scores_bf16, topk=1, **cfg)
        check(contrastive_loss(scores_bf16, block_rows=16, **cfg), want, cfg, "bf16/tiled")

    print("KERNEL_OK")
</pallas_src>

<mosaic_0001>
module attributes {stable_mosaic.version = 11 : i64} {
  func.func @_contrastive_loss_kernel(%arg0: i32, %arg1: i32, %arg2: memref<8x32xf32, #tpu.memory_space<vmem>>, %arg3: memref<8x1xf32, #tpu.memory_space<vmem>>, %arg4: memref<1x32xf32, #tpu.memory_space<vmem>>, %arg5: memref<1x1x1xf32, #tpu.memory_space<vmem>>, %arg6: memref<1x1x32xf32, #tpu.memory_space<vmem>>, %arg7: memref<1x32xf32, #tpu.memory_space<vmem>>, %arg8: memref<8x1xf32, #tpu.memory_space<vmem>>, %arg9: memref<1x32xf32, #tpu.memory_space<vmem>>) attributes {dimension_semantics = [#tpu.dimension_semantics<parallel>, #tpu.dimension_semantics<arbitrary>], iteration_bounds = array<i64: 2, 2>, scalar_prefetch = 0 : i64, scratch_operands = 3 : i64, tpu.core_type = #tpu.core_type<tc>, window_params = [{transform_indices = @transform_0, window_bounds = array<i64: 8, 32>}, {transform_indices = @transform_1, window_bounds = array<i64: 8, 1>}, {pipeline_mode = #tpu.pipeline_mode<synchronous>, transform_indices = @transform_2, window_bounds = array<i64: 1, 32>}, {transform_indices = @transform_3, window_bounds = array<i64: 1, 1, 1>}, {transform_indices = @transform_4, window_bounds = array<i64: 1, 1, 32>}]} {
    %c0_i32 = arith.constant 0 : i32
    %0 = arith.cmpi eq, %arg1, %c0_i32 : i32
    %1 = arith.extui %0 : i1 to i32
    %c0_i32_0 = arith.constant 0 : i32
    %2 = arith.cmpi ne, %1, %c0_i32_0 : i32
    scf.if %2 {
      %cst_14 = arith.constant 0.000000e+00 : f32
      %25 = vector.broadcast %cst_14 : f32 to vector<1x32xf32>
      %c0_15 = arith.constant 0 : index
      %c0_16 = arith.constant 0 : index
      %26 = vector.load %arg7[%c0_15, %c0_16] : memref<1x32xf32, #tpu.memory_space<vmem>>, vector<1x32xf32>
      tpu.vector_store %arg7[%c0_15, %c0_16], %25 {strides = array<i32>} : memref<1x32xf32, #tpu.memory_space<vmem>>, vector<1x32xf32>,
    } else {
    }
    %c0 = arith.constant 0 : index
    %c0_1 = arith.constant 0 : index
    %3 = vector.load %arg2[%c0, %c0_1] : memref<8x32xf32, #tpu.memory_space<vmem>>, vector<8x32xf32>
    %cst = arith.constant 2.000000e-01 : f32
    %4 = vector.broadcast %cst : f32 to vector<8x32xf32>
    %5 = arith.addf %4, %3 : vector<8x32xf32>
    %c0_2 = arith.constant 0 : index
    %c0_3 = arith.constant 0 : index
    %6 = vector.load %arg3[%c0_2, %c0_3] : memref<8x1xf32, #tpu.memory_space<vmem>>, vector<8x1xf32>
    %7 = vector.broadcast %6 : vector<8x1xf32> to vector<8x32xf32>
    %8 = arith.subf %5, %7 : vector<8x32xf32>
    %cst_4 = arith.constant 0.000000e+00 : f32
    %9 = vector.broadcast %cst_4 : f32 to vector<8x32xf32>
    %10 = arith.maximumf %8, %9 : vector<8x32xf32>
    %c0_5 = arith.constant 0 : index
    %c0_6 = arith.constant 0 : index
    %11 = vector.load %arg4[%c0_5, %c0_6] : memref<1x32xf32, #tpu.memory_space<vmem>>, vector<1x32xf32>
    %12 = vector.broadcast %11 : vector<1x32xf32> to vector<8x32xf32>
    %13 = arith.subf %5, %12 : vector<8x32xf32>
    %cst_7 = arith.constant 0.000000e+00 : f32
    %14 = vector.broadcast %cst_7 : f32 to vector<8x32xf32>
    %15 = arith.maximumf %13, %14 : vector<8x32xf32>
    %16 = arith.addf %10, %15 : vector<8x32xf32>
    %c0_8 = arith.constant 0 : index
    %c0_9 = arith.constant 0 : index
    %17 = vector.load %arg7[%c0_8, %c0_9] : memref<1x32xf32, #tpu.memory_space<vmem>>, vector<1x32xf32>
    %cst_10 = arith.constant dense<0.000000e+00> : vector<32xf32>
    %18 = vector.multi_reduction <add>, %16, %cst_10 [0] : vector<8x32xf32> to vector<32xf32>
    %19 = vector.shape_cast %18 : vector<32xf32> to vector<1x32xf32>
    %20 = arith.addf %17, %19 : vector<1x32xf32>
    %c0_11 = arith.constant 0 : index
    %c0_12 = arith.constant 0 : index
    %21 = vector.load %arg7[%c0_11, %c0_12] : memref<1x32xf32, #tpu.memory_space<vmem>>, vector<1x32xf32>
    tpu.vector_store %arg7[%c0_11, %c0_12], %20 {strides = array<i32>} : memref<1x32xf32, #tpu.memory_space<vmem>>, vector<1x32xf32>,
    %c1_i32 = arith.constant 1 : i32
    %22 = arith.cmpi eq, %arg1, %c1_i32 : i32
    %23 = arith.extui %22 : i1 to i32
    %c0_i32_13 = arith.constant 0 : i32
    %24 = arith.cmpi ne, %23, %c0_i32_13 : i32
    scf.if %24 {
      %c0_14 = arith.constant 0 : index
      %c0_15 = arith.constant 0 : index
      %25 = vector.load %arg7[%c0_14, %c0_15] : memref<1x32xf32, #tpu.memory_space<vmem>>, vector<1x32xf32>
      %26 = vector.shape_cast %25 : vector<1x32xf32> to vector<1x1x32xf32>
      %cst_16 = arith.constant dense<0.000000e+00> : vector<1xf32>
      %27 = vector.multi_reduction <add>, %26, %cst_16 [1, 2] : vector<1x1x32xf32> to vector<1xf32>
      %28 = vector.shape_cast %27 : vector<1xf32> to vector<1x1x1xf32>
      %29 = vector.extract %28[0, 0, 0] : f32 from vector<1x1x1xf32>
      %30 = vector.broadcast %29 : f32 to vector<1x1xf32>
      %cst_17 = arith.constant 6.400000e+00 : f32
      %31 = vector.broadcast %cst_17 : f32 to vector<1x1xf32>
      %32 = arith.subf %30, %31 : vector<1x1xf32>
      %cst_18 = arith.constant 0.00100806449 : f32
      %33 = vector.broadcast %cst_18 : f32 to vector<1x1xf32>
      %34 = arith.mulf %32, %33 : vector<1x1xf32>
      %cst_19 = arith.constant 0.000000e+00 : f32
      %35 = vector.broadcast %cst_19 : f32 to vector<1x1x32xf32>
      %c0_20 = arith.constant 0 : index
      %c0_21 = arith.constant 0 : index
      %c0_22 = arith.constant 0 : index
      %36 = vector.load %arg6[%c0_20, %c0_21, %c0_22] : memref<1x1x32xf32, #tpu.memory_space<vmem>>, vector<1x1x32xf32>
      tpu.vector_store %arg6[%c0_20, %c0_21, %c0_22], %35 {strides = array<i32>} : memref<1x1x32xf32, #tpu.memory_space<vmem>>, vector<1x1x32xf32>,
      %37 = vector.shape_cast %34 : vector<1x1xf32> to vector<1x1x1xf32>
      %c0_23 = arith.constant 0 : index
      %c0_24 = arith.constant 0 : index
      %c0_25 = arith.constant 0 : index
      %38 = vector.load %arg5[%c0_23, %c0_24, %c0_25] : memref<1x1x1xf32, #tpu.memory_space<vmem>>, vector<1x1x1xf32>
      tpu.vector_store %arg5[%c0_23, %c0_24, %c0_25], %37 {strides = array<i32>} : memref<1x1x1xf32, #tpu.memory_space<vmem>>, vector<1x1x1xf32>,
    } else {
    }
    return
  }
  func.func @transform_0(%arg0: i32, %arg1: i32) -> (i32, i32) {
    %c2_i32 = arith.constant 2 : i32
    %0 = arith.muli %arg0, %c2_i32 : i32
    %1 = arith.addi %0, %arg1 : i32
    %c0_i32 = arith.constant 0 : i32
    %c0_i32_0 = arith.constant 0 : i32
    return %1, %c0_i32 : i32, i32
  }
  func.func @transform_1(%arg0: i32, %arg1: i32) -> (i32, i32) {
    %c2_i32 = arith.constant 2 : i32
    %0 = arith.muli %arg0, %c2_i32 : i32
    %1 = arith.addi %0, %arg1 : i32
    %c0_i32 = arith.constant 0 : i32
    %c0_i32_0 = arith.constant 0 : i32
    return %1, %c0_i32 : i32, i32
  }
  func.func @transform_2(%arg0: i32, %arg1: i32) -> (i32, i32) {
    %c0_i32 = arith.constant 0 : i32
    %c0_i32_0 = arith.constant 0 : i32
    %c0_i32_1 = arith.constant 0 : i32
    return %c0_i32, %c0_i32_0 : i32, i32
  }
  func.func @transform_3(%arg0: i32, %arg1: i32) -> (i32, i32, i32) {
    %c0_i32 = arith.constant 0 : i32
    %c0_i32_0 = arith.constant 0 : i32
    %c0_i32_1 = arith.constant 0 : i32
    return %arg0, %c0_i32, %c0_i32_0 : i32, i32, i32
  }
  func.func @transform_4(%arg0: i32, %arg1: i32) -> (i32, i32, i32) {
    %c0_i32 = arith.constant 0 : i32
    %c0_i32_0 = arith.constant 0 : i32
    %c0_i32_1 = arith.constant 0 : i32
    return %arg0, %c0_i32, %c0_i32_0 : i32, i32, i32
  }
}

</mosaic_0001>

<llo_original>
// kernel: tpu_custom_call.1
$region0: #{tpu_custom_call.1}
  #allocation0 [shape = 'u32[]', space=smem, size = 0x4, offset = 0x4, fixed_abs, tag = 'smem constant byte address 0x4 - core index']
  #allocation1 [shape = 'u32[144,128]{1,0:T(1,128)}', space=vmem, size = 0x12000, scoped, tag = 'internal scratch']
  #allocation2 [shape = 'f32[1,32]{1,0:T(1,128)}', space=vmem, size = 0x200, scoped, tag = 'scratch operand']
  #allocation3 [shape = 'f32[8,1]{1,0:T(8,128)}', space=vmem, size = 0x1000, scoped, tag = 'scratch operand']
  #allocation4 [shape = 'f32[1,32]{1,0:T(1,128)}', space=vmem, size = 0x200, scoped, tag = 'scratch operand']
  %s0 = inlined_call_operand.vmem [shape: f32[32,32], index: 0, kind: input, shape index: {}]
  %s1 = inlined_call_operand.vmem [shape: f32[32,1], index: 1, kind: input, shape index: {}]
  %s2 = inlined_call_operand.vmem [shape: f32[1,32], index: 2, kind: input, shape index: {}]
  %s3 = inlined_call_operand.vmem [shape: f32[2,1,1], index: 3, kind: output, shape index: {0}]
  %s4 = inlined_call_operand.hbm [shape: f32[2,1,32], index: 4, kind: output, shape index: {1}]
  %5 = xla_tuple %s3, %s4
  %s6 = sld [smem:[#allocation0]]
  $region61: #{tpu_custom_call.1} parent=0
    _
  %s8 = ssub.s32 1, %s6
  %s9 = scalar_select 0, %s8, %s6
  $region1: #{tpu_custom_call.1} parent=0
    #allocation5 [shape = 'u8[1024]{0}', space=vmem, size = 0x400, scoped, tag = 'output window, operand 1']
    #allocation6 [shape = 's32[2]{0}', space=sflag, size = 0x8, scoped, tag = 'scoped memory for tpu_custom_call.1']
    %10 = vsyncpa [#allocation6], 0
    %s11 = scalar_lea.sflag [#allocation6], 1
    %12 = vsyncpa %s11, 0
    loop: start=0, step=1, limit=6
    $region2: #{tpu_custom_call.1} parent=1 // loop_pre_header
      _
    $region3: #{tpu_custom_call.1} parent=1 // loop_header
      %s14 = sphi 0, %s18
      %p15 = scmp.ge.s32.totalorder %s14, 6
      %s21 = sphi 0, %s33
      %s22 = sphi 0, %s29
      %s23 = sphi 0, %s21
      %s24 = sphi 0, %s22
      %s25 = sphi 0, %s23
      %s26 = sphi 0, %s24
      %s40 = sphi 0, %s42
      %s43 = sphi 0, %s40
      %s44 = sphi 0, %s43
      %s60 = sphi 0, %s44
      %s70 = sphi 0, %s72
      %s73 = sphi 0, %s70
      %s74 = sphi 0, %s73
      %s90 = sphi 0, %s74
      %s94 = sphi 0, %s94
      %s96 = sphi 0, %s94
      %s97 = sphi 0, %s96
      %s111 = sphi 0, %s97
      %s117 = sphi 0, %s119
      %s120 = sphi 0, %s117
      %s121 = sphi 0, %s120
      %s137 = sphi 0, %s121
      %s143 = sphi 0, %s145
      %s146 = sphi 0, %s143
      %s147 = sphi 0, %s146
      %s163 = sphi 0, %s147
    $region4: #{tpu_custom_call.1} parent=1 // loop_header_branch
      %17 = sbr.rel (%p15) target = $region8
    $region5: #{tpu_custom_call.1} parent=1 // loop_body
      %s19 = ssub.s32 %s14, 1
      %s20 = ssub.s32 %s14, 2
      %s27 = sadd.s32 1, %s22
      %p28 = scmp.ge.s32.totalorder %s27, 2
      %s29 = scalar_select %p28, 0, %s27
      %s30 = sadd.s32 1, %s21
      %s31 = scalar_select %p28, %s30, %s21
      %p32 = scmp.ge.s32.totalorder %s31, 2
      %s33 = scalar_select %p32, 0, %s31
      %s34 = smul.u32 %s21, 2
      %s35 = sadd.s32 %s34, %s22
      %s36 = smul.u32 %s33, 2
      %s37 = sadd.s32 %s36, %s29
      %s38 = ssub.s32 %s35, %s37
      %p39 = scmp.eq.s32.totalorder %s38, 0
      %s41 = sadd.s32 %s40, 1
      %s42 = scalar_select %p39, %s40, %s41
      %p45 = pneg %p39
      %p46 = scmp.eq.s32.totalorder %s14, 3
      %p47 = por %p45, %p46
      %p48 = scmp.ne.s32.totalorder %s40, %s43
      %p49 = scmp.eq.s32.totalorder %s14, 0
      %p50 = por %p48, %p49
      %p51 = scmp.ne.s32.totalorder %s40, %s43
      %p52 = scmp.eq.s32.totalorder %s19, 3
      %p53 = por %p51, %p52
      %p54 = scmp.ne.s32.totalorder %s43, %s44
      %p55 = scmp.eq.s32.totalorder %s19, 0
      %p56 = por %p54, %p55
      %p57 = scmp.ne.s32.totalorder %s43, %s44
      %p58 = scmp.eq.s32.totalorder %s20, 3
      %p59 = por %p57, %p58
      %p61 = scmp.ne.s32.totalorder %s44, %s60
      %p62 = scmp.eq.s32.totalorder %s20, 0
      %p63 = por %p61, %p62
      %s64 = smul.u32 %s21, 2
      %s65 = sadd.s32 %s64, %s22
      %s66 = smul.u32 %s33, 2
      %s67 = sadd.s32 %s66, %s29
      %s68 = ssub.s32 %s65, %s67
      %p69 = scmp.eq.s32.totalorder %s68, 0
      %s71 = sadd.s32 %s70, 1
      %s72 = scalar_select %p69, %s70, %s71
      %p75 = pneg %p69
      %p76 = scmp.eq.s32.totalorder %s14, 3
      %p77 = por %p75, %p76
      %p78 = scmp.ne.s32.totalorder %s70, %s73
      %p79 = scmp.eq.s32.totalorder %s14, 0
      %p80 = por %p78, %p79
      %p81 = scmp.ne.s32.totalorder %s70, %s73
      %p82 = scmp.eq.s32.totalorder %s19, 3
      %p83 = por %p81, %p82
      %p84 = scmp.ne.s32.totalorder %s73, %s74
      %p85 = scmp.eq.s32.totalorder %s19, 0
      %p86 = por %p84, %p85
      %p87 = scmp.ne.s32.totalorder %s73, %s74
      %p88 = scmp.eq.s32.totalorder %s20, 3
      %p89 = por %p87, %p88
      %p91 = scmp.ne.s32.totalorder %s74, %s90
      %p92 = scmp.eq.s32.totalorder %s20, 0
      %p93 = por %p91, %p92
      %s95 = sadd.s32 %s94, 1
      %p98 = scmp.eq.s32.totalorder %s14, 3
      %p99 = scmp.ne.s32.totalorder %s94, %s96
      %p100 = scmp.eq.s32.totalorder %s14, 0
      %p101 = por %p99, %p100
      %p102 = scmp.ne.s32.totalorder %s94, %s96
      %p103 = scmp.eq.s32.totalorder %s19, 3
      %p104 = por %p102, %p103
      %p105 = scmp.ne.s32.totalorder %s96, %s97
      %p106 = scmp.eq.s32.totalorder %s19, 0
      %p107 = por %p105, %p106
      %p108 = scmp.ne.s32.totalorder %s96, %s97
      %p109 = scmp.eq.s32.totalorder %s20, 3
      %p110 = por %p108, %p109
      %p112 = scmp.ne.s32.totalorder %s97, %s111
      %p113 = scmp.eq.s32.totalorder %s20, 0
      %p114 = por %p112, %p113
      %s115 = ssub.s32 %s21, %s33
      %p116 = scmp.eq.s32.totalorder %s115, 0
      %s118 = sadd.s32 %s117, 1
      %s119 = scalar_select %p116, %s117, %s118
      %p122 = pneg %p116
      %p123 = scmp.eq.s32.totalorder %s14, 3
      %p124 = por %p122, %p123
      %p125 = scmp.ne.s32.totalorder %s117, %s120
      %p126 = scmp.eq.s32.totalorder %s14, 0
      %p127 = por %p125, %p126
      %p128 = scmp.ne.s32.totalorder %s117, %s120
      %p129 = scmp.eq.s32.totalorder %s19, 3
      %p130 = por %p128, %p129
      %p131 = scmp.ne.s32.totalorder %s120, %s121
      %p132 = scmp.eq.s32.totalorder %s19, 0
      %p133 = por %p131, %p132
      %p134 = scmp.ne.s32.totalorder %s120, %s121
      %p135 = scmp.eq.s32.totalorder %s20, 3
      %p136 = por %p134, %p135
      %p138 = scmp.ne.s32.totalorder %s121, %s137
      %p139 = scmp.eq.s32.totalorder %s20, 0
      %p140 = por %p138, %p139
      %s141 = ssub.s32 %s21, %s33
      %p142 = scmp.eq.s32.totalorder %s141, 0
      %s144 = sadd.s32 %s143, 1
      %s145 = scalar_select %p142, %s143, %s144
      %p148 = pneg %p142
      %p149 = scmp.eq.s32.totalorder %s14, 3
      %p150 = por %p148, %p149
      %p151 = scmp.ne.s32.totalorder %s143, %s146
      %p152 = scmp.eq.s32.totalorder %s14, 0
      %p153 = por %p151, %p152
      %p154 = scmp.ne.s32.totalorder %s143, %s146
      %p155 = scmp.eq.s32.totalorder %s19, 3
      %p156 = por %p154, %p155
      %p157 = scmp.ne.s32.totalorder %s146, %s147
      %p158 = scmp.eq.s32.totalorder %s19, 0
      %p159 = por %p157, %p158
      %p160 = scmp.ne.s32.totalorder %s146, %s147
      %p161 = scmp.eq.s32.totalorder %s20, 3
      %p162 = por %p160, %p161
      %p164 = scmp.ne.s32.totalorder %s147, %s163
      %p165 = scmp.eq.s32.totalorder %s20, 0
      %p166 = por %p164, %p165
      %p167 = scmp.le.s32.totalorder 1, %s14
      %p168 = scmp.lt.s32.totalorder %s14, 5
      %p169 = pnand %p167, %p168
      %p170 = pneg %p169
      // Predicated region
      $region9: #{tpu_custom_call.1} parent=5 // pred_check
        _
      $region10: #{tpu_custom_call.1} parent=5 // pred_check_branch
        %172 = sbr.rel (%p169) target = $region12
      $region11: #{tpu_custom_call.1} parent=5 // pred_region
        %s173 = ssub.s32 %s14, 1
        // Predicated region
        $region13: #{tpu_custom_call.1} parent=11 // pred_check
          %p174 = pneg %p107
        $region14: #{tpu_custom_call.1} parent=11 // pred_check_branch
          %176 = sbr.rel (%p174) target = $region16
        $region15: #{tpu_custom_call.1} parent=11 // pred_region
          _
        $region16: #{tpu_custom_call.1} parent=11 // pred_fallthru
          _
      $region12: #{tpu_custom_call.1} parent=5 // pred_fallthru
        _
      %p177 = scmp.lt.s32.totalorder %s14, 4
      // Predicated region
      $region17: #{tpu_custom_call.1} parent=5 // pred_check
        %p178 = pneg %p177
      $region18: #{tpu_custom_call.1} parent=5 // pred_check_branch
        %180 = sbr.rel (%p178) target = $region20
      $region19: #{tpu_custom_call.1} parent=5 // pred_region
        // Predicated region
        $region21: #{tpu_custom_call.1} parent=19 // pred_check
          %p181 = pneg %p50
        $region22: #{tpu_custom_call.1} parent=19 // pred_check_branch
          %183 = sbr.rel (%p181) target = $region24
        $region23: #{tpu_custom_call.1} parent=19 // pred_region
          %s184 = smul.u32 %s21, 2
          %s185 = sadd.s32 %s184, %s22
          %p186 = scmp.lt.s32.totalorder %s185, 3
          %s187 = scalar_select %p186, %s185, 3
          %s188 = smul.addr %s187, 8
          %s189 = scalar_lea.vmem %s0, %s188
          %s190 = smul.u32 %s21, 2
          %s191 = sadd.s32 %s190, %s22
        $region24: #{tpu_custom_call.1} parent=19 // pred_fallthru
          _
        // Predicated region
        $region25: #{tpu_custom_call.1} parent=19 // pred_check
          %p192 = pneg %p80
        $region26: #{tpu_custom_call.1} parent=19 // pred_check_branch
          %194 = sbr.rel (%p192) target = $region28
        $region27: #{tpu_custom_call.1} parent=19 // pred_region
          %s195 = smul.u32 %s21, 2
          %s196 = sadd.s32 %s195, %s22
          %p197 = scmp.lt.s32.totalorder %s196, 3
          %s198 = scalar_select %p197, %s196, 3
          %s199 = smul.addr %s198, 8
          %s200 = scalar_lea.vmem %s1, %s199
          %s201 = smul.u32 %s21, 2
          %s202 = sadd.s32 %s201, %s22
        $region28: #{tpu_custom_call.1} parent=19 // pred_fallthru
          _
      $region20: #{tpu_custom_call.1} parent=5 // pred_fallthru
        _
      %p203 = scmp.le.s32.totalorder 1, %s14
      %p204 = scmp.lt.s32.totalorder %s14, 5
      %p205 = pnand %p203, %p204
      %p206 = pneg %p205
      // Predicated region
      $region29: #{tpu_custom_call.1} parent=5 // pred_check
        _
      $region30: #{tpu_custom_call.1} parent=5 // pred_check_branch
        %208 = sbr.rel (%p205) target = $region32
      $region31: #{tpu_custom_call.1} parent=5 // pred_region
        %s209 = ssub.s32 %s14, 1
        %s210 = smul.u32 %s23, 2
        %s211 = sadd.s32 %s210, %s24
        %p212 = scmp.lt.s32.totalorder %s211, 3
        %s213 = scalar_select %p212, %s211, 3
        %s214 = smul.addr %s213, 8
        %s215 = scalar_lea.vmem %s0, %s214
        %p216 = pneg %p56
        %p217 = pneg %p53
        %s218 = smul.u32 %s23, 2
        %s219 = sadd.s32 %s218, %s24
        %p220 = scmp.lt.s32.totalorder %s219, 3
        %s221 = scalar_select %p220, %s219, 3
        %s222 = smul.addr %s221, 8
        %s223 = scalar_lea.vmem %s1, %s222
        %p224 = pneg %p86
        %p225 = pneg %p83
        %p226 = pneg %p107
        %p227 = pneg %p104
        %p228 = pneg %p133
        %p229 = pneg %p130
        %p230 = scmp.lt.s32.totalorder %s23, 1
        %s231 = scalar_select %p230, %s23, 1
        %s232 = scalar_lea.vmem %s3, %s231
        %p233 = pneg %p159
        %p234 = pneg %p156
        %s235 = sand.u32 %s146, 1
        %s236 = scalar_lea.sflag [#allocation6], %s235
        %s237 = sand.u32 %s146, 1
        %s238 = scalar_lea.vmem [#allocation5], %s237
        %s239 = smul.u32 %s23, 2
        %s240 = sadd.s32 %s239, %s24
        %p241 = scmp.lt.s32.totalorder %s240, 3
        %s242 = scalar_select %p241, %s240, 3
        %s243 = smul.addr %s242, 8
        %s244 = scalar_lea.vmem %s0, %s243
        %s245 = smul.u32 %s23, 2
        %s246 = sadd.s32 %s245, %s24
        %s247 = smul.u32 %s23, 2
        %s248 = sadd.s32 %s247, %s24
        %p249 = scmp.lt.s32.totalorder %s248, 3
        %s250 = scalar_select %p249, %s248, 3
        %s251 = smul.addr %s250, 8
        %s252 = scalar_lea.vmem %s1, %s251
        %s253 = smul.u32 %s23, 2
        %s254 = sadd.s32 %s253, %s24
        %p255 = scmp.lt.s32.totalorder %s23, 1
        %s256 = scalar_select %p255, %s23, 1
        %s257 = scalar_lea.vmem %s3, %s256
        %p258 = scmp.eq.s32.totalorder %s24, 0
        // Predicated region
        $region33: #{tpu_custom_call.1} parent=31 // pred_check
          %p259 = pneg %p258
        $region34: #{tpu_custom_call.1} parent=31 // pred_check_branch
          %261 = sbr.rel (%p259) target = $region36
        $region35: #{tpu_custom_call.1} parent=31 // pred_region
          %vm262 = vcmask 253952
          %263 = vst.msk [vmem:[#allocation2] sm:$0x1] %vm262, 0.0
        $region36: #{tpu_custom_call.1} parent=31 // pred_fallthru
          _
        %v264 = vld [vmem:[%s244] sm:$0xff]
        %v265 = vadd.f32 %v264, 0.2
        %v266 = vld [vmem:[%s252] sm:$0xff]
        %268 = vset.pattern.permute.xlu0 0
        %269 = vperm.xlu0 %268, %v266
        %v270 = vpop.permute.xlu0 %269
        %v272 = vsub.f32 %v265, %v270
        %v273 = vmax.f32 %v272, 0.0
        %v274 = vld [vmem:[%s2] sm:$0x1]
        %v276 = vlaneseq
        %v277 = vshrl.u32 %v276, 7
        %v278 = vsub.s32 0, %v277
        %v279 = vrot.slane %v274, %v278
        %v281 = vsub.f32 %v265, %v279
        %v282 = vmax.f32 %v281, 0.0
        %v283 = vadd.f32 %v273, %v282
        %v284 = vld [vmem:[#allocation2] sm:$0x1]
        %vm285 = vcmask 261120
        %v286 = vsel %vm285, %v283, 0.0
        %v287 = vrot.slane %v286, 4
        %v288 = vadd.f32 %v286, %v287
        %v289 = vrot.slane %v288, 2
        %v290 = vadd.f32 %v288, %v289
        %v291 = vrot.slane %v290, 1
        %v292 = vadd.f32 %v290, %v291
        %v293 = vadd.f32 %v284, %v292
        %vm294 = vcmask 253952
        %295 = vst.msk [vmem:[#allocation2] sm:$0x1] %vm294, %v293
        %p296 = scmp.eq.s32.totalorder %s24, 1
        // Predicated region
        $region37: #{tpu_custom_call.1} parent=31 // pred_check
          %p297 = pneg %p296
        $region38: #{tpu_custom_call.1} parent=31 // pred_check_branch
          %299 = sbr.rel (%p297) target = $region40
        $region39: #{tpu_custom_call.1} parent=31 // pred_region
          %v300 = vld [vmem:[#allocation2] sm:$0x1]
          %v301 = vsel %vm294, %v300, 0.0
          %302 = vadd.xlane.f32.xlu0 %v301
          %v303 = vpop.xlane.xlu0 %302
          %v304 = vrot.slane %v303, 4
          %v305 = vadd.f32 %v303, %v304
          %v306 = vrot.slane %v305, 2
          %v307 = vadd.f32 %v305, %v306
          %v308 = vrot.slane %v307, 1
          %v309 = vadd.f32 %v307, %v308
          %s310 = vtos %v309
          %v311 = vstv %s310
          %v312 = vsub.f32 %v311, 6.4
          %v313 = vmul.f32 %v312, 0.0010080645
          %314 = vst.msk [vmem:[%s238] sm:$0x1] %vm294, 0.0
          %vm315 = vcmask 0
          %316 = vst.msk [vmem:[%s257] sm:$0x1] %vm315, %v313
        $region40: #{tpu_custom_call.1} parent=31 // pred_fallthru
          _
        %p317 = scmp.lt.s32.totalorder %s23, 1
        %s318 = scalar_select %p317, %s23, 1
        %s319 = scalar_lea.vmem %s3, %s318
        %s320 = sand.u32 %s146, 1
        %s321 = scalar_lea.sflag [#allocation6], %s320
        %s322 = sand.u32 %s146, 1
        %s323 = scalar_lea.vmem [#allocation5], %s322
        // Predicated region
        $region41: #{tpu_custom_call.1} parent=31 // pred_check
          %p324 = pneg %p130
        $region42: #{tpu_custom_call.1} parent=31 // pred_check_branch
          %326 = sbr.rel (%p324) target = $region44
        $region43: #{tpu_custom_call.1} parent=31 // pred_region
          _
        $region44: #{tpu_custom_call.1} parent=31 // pred_fallthru
          _
        // Predicated region
        $region45: #{tpu_custom_call.1} parent=31 // pred_check
          %p327 = pneg %p156
        $region46: #{tpu_custom_call.1} parent=31 // pred_check_branch
          %329 = sbr.rel (%p327) target = $region48
        $region47: #{tpu_custom_call.1} parent=31 // pred_region
          %s331 = ssub.s32 16, 16
          %332 = vsyncadd %s321, %s331
          %s333 = smul.addr %s23, 16
          %s334 = scalar_lea.hbm %s4, %s333
          %s336 = sshll.u32 %s323, 4
          %s337 = int_to_ptr.vmem [resolvable:$true] %s336
          %339 = dma.vmem_to_hbm [thread:$0]  %s337, 16, %s334, %s321
        $region48: #{tpu_custom_call.1} parent=31 // pred_fallthru
          _
      $region32: #{tpu_custom_call.1} parent=5 // pred_fallthru
        _
      %p340 = scmp.le.s32.totalorder 2, %s14
      // Predicated region
      $region49: #{tpu_custom_call.1} parent=5 // pred_check
        %p341 = pneg %p340
      $region50: #{tpu_custom_call.1} parent=5 // pred_check_branch
        %343 = sbr.rel (%p341) target = $region52
      $region51: #{tpu_custom_call.1} parent=5 // pred_region
        %s344 = ssub.s32 %s14, 2
        // Predicated region
        $region53: #{tpu_custom_call.1} parent=51 // pred_check
          %p345 = pneg %p136
        $region54: #{tpu_custom_call.1} parent=51 // pred_check_branch
          %347 = sbr.rel (%p345) target = $region56
        $region55: #{tpu_custom_call.1} parent=51 // pred_region
          %p348 = scmp.lt.s32.totalorder %s25, 1
          %s349 = scalar_select %p348, %s25, 1
          %s350 = scalar_lea.vmem %s3, %s349
        $region56: #{tpu_custom_call.1} parent=51 // pred_fallthru
          _
        // Predicated region
        $region57: #{tpu_custom_call.1} parent=51 // pred_check
          %p351 = pneg %p162
        $region58: #{tpu_custom_call.1} parent=51 // pred_check_branch
          %353 = sbr.rel (%p351) target = $region60
        $region59: #{tpu_custom_call.1} parent=51 // pred_region
          %s354 = sand.u32 %s147, 1
          %s355 = scalar_lea.sflag [#allocation6], %s354
          %s356 = sand.u32 %s147, 1
          %s357 = scalar_lea.vmem [#allocation5], %s356
          %358 = dma.done %s355, 16
        $region60: #{tpu_custom_call.1} parent=51 // pred_fallthru
          _
      $region52: #{tpu_custom_call.1} parent=5 // pred_fallthru
        _
    $region6: #{tpu_custom_call.1} parent=1 // loop_footer
      %s18 = sadd.s32 1, %s14
    $region7: #{tpu_custom_call.1} parent=1 // loop_footer_branch
      %13 = sbr.rel target = $region3
    $region8: #{tpu_custom_call.1} parent=1 // loop_exit
      _
    %359 = vsyncpa [#allocation6], 1
    %s360 = scalar_lea.sflag [#allocation6], 1
    %361 = vsyncpa %s360, 1

</llo_original>
